<compile_context>
chip_gen: v6e
topology: v6e:2x2x1
jax: 0.10.0
libtpu: 0.0.40
codegen_flags: <defaults>
</compile_context>

<pallas_src>
import functools

import jax
import jax.numpy as jnp
from jax.experimental import pallas as pl
from jax.experimental.pallas import tpu as pltpu


def _round_up(x: int, m: int) -> int:
    return ((x + m - 1) // m) * m


def _make_bert_self_output_kernel(eps: float, mxu_dtype):
    def kernel(x_ref, res_ref, w_ref, p_ref, o_ref):
        # x_ref:   (TM, H) hidden_states row tile (native dtype)
        # res_ref: (TM, H) residual row tile
        # w_ref:   (H, H)  dense weight, pre-transposed so y = x @ w (resident)
        # p_ref:   (3, H)  fused [bias; ln_gamma; ln_beta] (f32, resident)

        # Dense: operands fed to the MXU in `mxu_dtype` (bf16 on the fast path),
        # f32 accumulation via preferred_element_type.  astype is a no-op when
        # the stored dtype already matches.
        x = x_ref[...].astype(mxu_dtype)
        w = w_ref[...].astype(mxu_dtype)
        h = jnp.dot(x, w, preferred_element_type=jnp.float32)

        p = p_ref[...].astype(jnp.float32)            # (3, H), already f32
        bias, gamma, beta = p[0:1, :], p[1:2, :], p[2:3, :]

        # Bias + dropout (identity, inference) + residual, all in f32.
        y = h + bias + res_ref[...].astype(jnp.float32)

        # LayerNorm over H with two-pass statistics (cancellation-safe).
        inv_h = jnp.float32(1.0 / y.shape[-1])
        mean = jnp.sum(y, axis=-1, keepdims=True) * inv_h
        d = y - mean
        var = jnp.sum(d * d, axis=-1, keepdims=True) * inv_h
        # Fold gamma into the rsqrt factor; rsqrt runs on the EUP slot.
        scale = jax.lax.rsqrt(var + jnp.float32(eps)) * gamma
        o_ref[...] = (d * scale + beta).astype(o_ref.dtype)

    return kernel


@functools.partial(jax.jit, static_argnames=("eps", "block_m", "mxu_dtype"))
def bert_self_output(hidden_states, input_tensor, weight_t, bias, ln_gamma,
                     ln_beta, eps: float = 1e-12, block_m: int = 512,
                     mxu_dtype=None):
    """Fused dense + residual + LayerNorm (BertSelfOutput forward).

    hidden_states, input_tensor: (B, S, H)
    weight_t: (H_in, H_out) — nn.Linear weight ALREADY transposed once at
              parameter-load time (kernel computes x @ weight_t).
    bias, ln_gamma, ln_beta: (H,)
    mxu_dtype: dtype fed to the MXU (None -> use the activation dtype).
    """
    B, S, H = hidden_states.shape
    M = B * S

    x2 = hidden_states.reshape(M, H)
    r2 = input_tensor.reshape(M, H)
    # Fuse the three tiny per-step operands into one (3, H) resident array.
    params = jnp.stack([bias, ln_gamma, ln_beta], axis=0).astype(jnp.float32)

    if mxu_dtype is None:
        mxu_dtype = x2.dtype

    itemsize = x2.dtype.itemsize
    w_itemsize = weight_t.dtype.itemsize

    # Row tile: multiple of the dtype's sublane packing (8 for f32, 16 for
    # bf16), capped at block_m, and small enough that the grid has >= 2 steps
    # when M allows it (v7x megacore).  No padding: Pallas masks the partial
    # trailing block on load/store.
    sub = max(8, 32 // itemsize)
    tm = max(sub, min(block_m, _round_up(pl.cdiv(M, 2), sub)))
    grid_m = pl.cdiv(M, tm)

    # VMEM budget: double-buffered x / residual / out row tiles + the resident
    # weight (+ params), plus headroom.  Clamped to [32 MiB, 64 MiB] so it is
    # valid on v5e/v6e (128 MiB physical) and v7x (64 MiB physical).
    vmem_bytes = (2 * 3 * tm * H * itemsize
                  + 2 * H * H * w_itemsize
                  + 2 * 3 * H * 4
                  + (8 << 20))
    vmem_bytes = int(min(max(vmem_bytes, 32 << 20), 64 << 20))

    cost = pl.CostEstimate(
        flops=2 * M * H * H,
        transcendentals=M,  # one rsqrt per row
        bytes_accessed=3 * M * H * itemsize + H * H * w_itemsize + 3 * H * 4,
    )

    out = pl.pallas_call(
        _make_bert_self_output_kernel(float(eps), mxu_dtype),
        out_shape=jax.ShapeDtypeStruct((M, H), hidden_states.dtype),
        grid_spec=pltpu.PrefetchScalarGridSpec(
            num_scalar_prefetch=0,
            grid=(grid_m,),
            in_specs=[
                pl.BlockSpec((tm, H), lambda i: (i, 0)),   # x row tile
                pl.BlockSpec((tm, H), lambda i: (i, 0)),   # residual row tile
                pl.BlockSpec((H, H), lambda i: (0, 0)),    # weight (resident)
                pl.BlockSpec((3, H), lambda i: (0, 0)),    # bias/gamma/beta
            ],
            out_specs=pl.BlockSpec((tm, H), lambda i: (i, 0)),
        ),
        compiler_params=pltpu.CompilerParams(
            # Row tiles are independent -> parallel axis (sharded across the
            # two TensorCores on v7x; harmless on v5e/v6e).
            dimension_semantics=("parallel",),
            vmem_limit_bytes=vmem_bytes),
        cost_estimate=cost,
    )(x2, r2, weight_t, params)

    return out.reshape(B, S, H)


def _reference(hidden_states, input_tensor, weight, bias, gamma, beta,
               eps=1e-12):
    h = jnp.einsum("bsh,oh->bso", hidden_states, weight) + bias
    y = h + input_tensor
    mean = jnp.mean(y, axis=-1, keepdims=True)
    var = jnp.mean((y - mean) ** 2, axis=-1, keepdims=True)
    return (y - mean) / jnp.sqrt(var + eps) * gamma + beta


if __name__ == "__main__":
    B, S, H = 2, 8, 32          # batch=2, seq=8, hidden_size=32
    eps = 1e-12                 # config.layer_norm_eps (BERT default)

    key = jax.random.PRNGKey(0)
    k1, k2, k3, k4 = jax.random.split(key, 4)

    hidden_states = jax.random.normal(k1, (B, S, H), dtype=jnp.float32)
    input_tensor = jax.random.normal(k2, (B, S, H), dtype=jnp.float32)

    # nn.Linear keeps weight as (out, in); transpose ONCE at parameter-load
    # time (not per call) so the kernel does x @ weight_t.
    weight = jax.random.normal(k3, (H, H), dtype=jnp.float32) * (1.0 / jnp.sqrt(H))
    weight_t = jnp.asarray(weight.T)     # cached (in, out) layout
    bias = jax.random.normal(k4, (H,), dtype=jnp.float32) * 0.02
    ln_gamma = jnp.ones((H,), dtype=jnp.float32)
    ln_beta = jnp.zeros((H,), dtype=jnp.float32)

    # --- f32 path (tight correctness check) ---
    out_f32 = bert_self_output(hidden_states, input_tensor, weight_t, bias,
                               ln_gamma, ln_beta, eps=eps)
    out_f32 = jax.block_until_ready(out_f32)
    ref_f32 = _reference(hidden_states, input_tensor, weight, bias,
                         ln_gamma, ln_beta, eps)
    assert out_f32.shape == (B, S, H)
    assert jnp.allclose(out_f32, ref_f32, atol=1e-4, rtol=1e-4), \
        "f32 path mismatch vs reference"

    # --- bf16 I/O path (the mem-bound fast path; bf16 MXU, f32 LayerNorm) ---
    hs16 = hidden_states.astype(jnp.bfloat16)
    it16 = input_tensor.astype(jnp.bfloat16)
    wt16 = weight_t.astype(jnp.bfloat16)
    out_bf16 = bert_self_output(hs16, it16, wt16, bias, ln_gamma, ln_beta,
                                eps=eps)
    out_bf16 = jax.block_until_ready(out_bf16)
    ref_bf16 = _reference(hs16.astype(jnp.float32), it16.astype(jnp.float32),
                          wt16.T.astype(jnp.float32), bias, ln_gamma, ln_beta,
                          eps)
    assert out_bf16.shape == (B, S, H)
    assert out_bf16.dtype == jnp.bfloat16
    assert jnp.allclose(out_bf16.astype(jnp.float32), ref_bf16,
                        atol=2e-2, rtol=2e-2), "bf16 path mismatch vs reference"

    print("KERNEL_OK")
</pallas_src>

<mosaic_0001>
module attributes {stable_mosaic.version = 11 : i64} {
  func.func @kernel(%arg0: i32, %arg1: memref<8x32xf32, #tpu.memory_space<vmem>>, %arg2: memref<8x32xf32, #tpu.memory_space<vmem>>, %arg3: memref<32x32xf32, #tpu.memory_space<vmem>>, %arg4: memref<3x32xf32, #tpu.memory_space<vmem>>, %arg5: memref<8x32xf32, #tpu.memory_space<vmem>>) attributes {dimension_semantics = [#tpu.dimension_semantics<parallel>], iteration_bounds = array<i64: 2>, scalar_prefetch = 0 : i64, scratch_operands = 0 : i64, tpu.core_type = #tpu.core_type<tc>, window_params = [{transform_indices = @transform_0, window_bounds = array<i64: 8, 32>}, {transform_indices = @transform_1, window_bounds = array<i64: 8, 32>}, {pipeline_mode = #tpu.pipeline_mode<synchronous>, transform_indices = @transform_2, window_bounds = array<i64: 32, 32>}, {pipeline_mode = #tpu.pipeline_mode<synchronous>, transform_indices = @transform_3, window_bounds = array<i64: 3, 32>}, {transform_indices = @transform_4, window_bounds = array<i64: 8, 32>}]} {
    %c0 = arith.constant 0 : index
    %c0_0 = arith.constant 0 : index
    %0 = vector.load %arg1[%c0, %c0_0] : memref<8x32xf32, #tpu.memory_space<vmem>>, vector<8x32xf32>
    %c0_1 = arith.constant 0 : index
    %c0_2 = arith.constant 0 : index
    %1 = vector.load %arg3[%c0_1, %c0_2] : memref<32x32xf32, #tpu.memory_space<vmem>>, vector<32x32xf32>
    %cst = arith.constant dense<0.000000e+00> : vector<8x32xf32>
    %2 = tpu.matmul %0, %1, %cst {dimension_numbers = #tpu.dot_dimension_numbers<[1], [0], [0], [1], [0, 0, 1, 1], [], []>} : vector<8x32xf32>, vector<32x32xf32>, vector<8x32xf32> -> vector<8x32xf32>
    %c0_3 = arith.constant 0 : index
    %c0_4 = arith.constant 0 : index
    %3 = vector.load %arg4[%c0_3, %c0_4] : memref<3x32xf32, #tpu.memory_space<vmem>>, vector<3x32xf32>
    %4 = vector.extract_strided_slice %3 {offsets = [0, 0], sizes = [1, 32], strides = [1, 1]} : vector<3x32xf32> to vector<1x32xf32>
    %5 = vector.extract_strided_slice %3 {offsets = [1, 0], sizes = [1, 32], strides = [1, 1]} : vector<3x32xf32> to vector<1x32xf32>
    %6 = vector.extract_strided_slice %3 {offsets = [2, 0], sizes = [1, 32], strides = [1, 1]} : vector<3x32xf32> to vector<1x32xf32>
    %7 = vector.broadcast %4 : vector<1x32xf32> to vector<8x32xf32>
    %8 = arith.addf %2, %7 : vector<8x32xf32>
    %c0_5 = arith.constant 0 : index
    %c0_6 = arith.constant 0 : index
    %9 = vector.load %arg2[%c0_5, %c0_6] : memref<8x32xf32, #tpu.memory_space<vmem>>, vector<8x32xf32>
    %10 = arith.addf %8, %9 : vector<8x32xf32>
    %cst_7 = arith.constant dense<0.000000e+00> : vector<8xf32>
    %11 = vector.multi_reduction <add>, %10, %cst_7 [1] : vector<8x32xf32> to vector<8xf32>
    %12 = vector.shape_cast %11 : vector<8xf32> to vector<8x1xf32>
    %cst_8 = arith.constant 3.125000e-02 : f32
    %13 = vector.broadcast %cst_8 : f32 to vector<8x1xf32>
    %14 = arith.mulf %12, %13 : vector<8x1xf32>
    %15 = vector.broadcast %14 : vector<8x1xf32> to vector<8x32xf32>
    %16 = arith.subf %10, %15 : vector<8x32xf32>
    %17 = arith.mulf %16, %16 : vector<8x32xf32>
    %cst_9 = arith.constant dense<0.000000e+00> : vector<8xf32>
    %18 = vector.multi_reduction <add>, %17, %cst_9 [1] : vector<8x32xf32> to vector<8xf32>
    %19 = vector.shape_cast %18 : vector<8xf32> to vector<8x1xf32>
    %cst_10 = arith.constant 3.125000e-02 : f32
    %20 = vector.broadcast %cst_10 : f32 to vector<8x1xf32>
    %21 = arith.mulf %19, %20 : vector<8x1xf32>
    %cst_11 = arith.constant 9.99999996E-13 : f32
    %22 = vector.broadcast %cst_11 : f32 to vector<8x1xf32>
    %23 = arith.addf %21, %22 : vector<8x1xf32>
    %24 = math.rsqrt %23 : vector<8x1xf32>
    %25 = vector.broadcast %24 : vector<8x1xf32> to vector<8x32xf32>
    %26 = vector.broadcast %5 : vector<1x32xf32> to vector<8x32xf32>
    %27 = arith.mulf %25, %26 : vector<8x32xf32>
    %28 = arith.mulf %16, %27 : vector<8x32xf32>
    %29 = vector.broadcast %6 : vector<1x32xf32> to vector<8x32xf32>
    %30 = arith.addf %28, %29 : vector<8x32xf32>
    %c0_12 = arith.constant 0 : index
    %c0_13 = arith.constant 0 : index
    %31 = vector.load %arg5[%c0_12, %c0_13] : memref<8x32xf32, #tpu.memory_space<vmem>>, vector<8x32xf32>
    tpu.vector_store %arg5[%c0_12, %c0_13], %30 {strides = array<i32>} : memref<8x32xf32, #tpu.memory_space<vmem>>, vector<8x32xf32>,
    return
  }
  func.func @transform_0(%arg0: i32) -> (i32, i32) {
    %c0_i32 = arith.constant 0 : i32
    %c0_i32_0 = arith.constant 0 : i32
    return %arg0, %c0_i32 : i32, i32
  }
  func.func @transform_1(%arg0: i32) -> (i32, i32) {
    %c0_i32 = arith.constant 0 : i32
    %c0_i32_0 = arith.constant 0 : i32
    return %arg0, %c0_i32 : i32, i32
  }
  func.func @transform_2(%arg0: i32) -> (i32, i32) {
    %c0_i32 = arith.constant 0 : i32
    %c0_i32_0 = arith.constant 0 : i32
    %c0_i32_1 = arith.constant 0 : i32
    return %c0_i32, %c0_i32_0 : i32, i32
  }
  func.func @transform_3(%arg0: i32) -> (i32, i32) {
    %c0_i32 = arith.constant 0 : i32
    %c0_i32_0 = arith.constant 0 : i32
    %c0_i32_1 = arith.constant 0 : i32
    return %c0_i32, %c0_i32_0 : i32, i32
  }
  func.func @transform_4(%arg0: i32) -> (i32, i32) {
    %c0_i32 = arith.constant 0 : i32
    %c0_i32_0 = arith.constant 0 : i32
    return %arg0, %c0_i32 : i32, i32
  }
}

</mosaic_0001>

<llo_original>
// kernel: bert_self_output.1
$region0: #{bert_self_output.1}
  #allocation0 [shape = 'u32[]', space=smem, size = 0x4, offset = 0x4, fixed_abs, tag = 'smem constant byte address 0x4 - core index']
  #allocation1 [shape = 'u32[144,128]{1,0:T(1,128)}', space=vmem, size = 0x12000, scoped, tag = 'internal scratch']
  %s0 = inlined_call_operand.vmem [shape: f32[16,32], index: 0, kind: input, shape index: {}]
  %s1 = inlined_call_operand.hbm [shape: f32[16,32], index: 1, kind: input, shape index: {}]
  %s2 = inlined_call_operand.hbm [shape: f32[32,32], index: 2, kind: input, shape index: {}]
  %s3 = inlined_call_operand.vmem [shape: f32[3,32], index: 3, kind: input, shape index: {}]
  %s4 = inlined_call_operand.hbm [shape: f32[16,32], index: 4, kind: output, shape index: {}]
  %s5 = sld [smem:[#allocation0]]
  $region57: #{bert_self_output.1} parent=0
    _
  %s7 = ssub.s32 1, %s5
  %s8 = scalar_select 0, %s7, %s5
  $region1: #{bert_self_output.1} parent=0
    #allocation2 [shape = 'u8[8192]{0}', space=vmem, size = 0x2000, scoped, tag = 'input window, operand 1']
    #allocation3 [shape = 's32[2]{0}', space=sflag, size = 0x8, scoped, tag = 'scoped memory for bert_self_output.1']
    #allocation4 [shape = 's32[2]{0}', space=sflag, size = 0x8, scoped, tag = 'scoped memory for bert_self_output.1']
    #allocation5 [shape = 'u8[16384]{0}', space=vmem, size = 0x4000, scoped, tag = 'input window, operand 2, single buffered']
    #allocation6 [shape = 's32[1]{0}', space=sflag, size = 0x4, scoped, tag = 'scoped memory for bert_self_output.1']
    #allocation7 [shape = 'u8[8192]{0}', space=vmem, size = 0x2000, scoped, tag = 'output window, operand 0']
    %9 = vsyncpa [#allocation3], 0
    %s10 = scalar_lea.sflag [#allocation3], 1
    %11 = vsyncpa %s10, 0
    %12 = vsyncpa [#allocation6], 0
    %13 = vsyncpa [#allocation4], 0
    %s14 = scalar_lea.sflag [#allocation4], 1
    %15 = vsyncpa %s14, 0
    loop: start=0, step=1, limit=4
    $region2: #{bert_self_output.1} parent=1 // loop_pre_header
      _
    $region3: #{bert_self_output.1} parent=1 // loop_header
      %s17 = sphi 0, %s21
      %p18 = scmp.ge.s32.totalorder %s17, 4
      %s27 = sphi 0, %s29
      %s30 = sphi 0, %s27
      %s31 = sphi 0, %s30
      %s47 = sphi 0, %s31
      %s53 = sphi 0, %s55
      %s56 = sphi 0, %s53
      %s57 = sphi 0, %s56
      %s73 = sphi 0, %s57
      %s77 = sphi 0, %s77
      %s79 = sphi 0, %s77
      %s80 = sphi 0, %s79
      %s94 = sphi 0, %s80
      %s98 = sphi 0, %s98
      %s100 = sphi 0, %s98
      %s101 = sphi 0, %s100
      %s115 = sphi 0, %s101
      %s121 = sphi 0, %s123
      %s124 = sphi 0, %s121
      %s125 = sphi 0, %s124
      %s141 = sphi 0, %s125
    $region4: #{bert_self_output.1} parent=1 // loop_header_branch
      %20 = sbr.rel (%p18) target = $region8
    $region5: #{bert_self_output.1} parent=1 // loop_body
      %s22 = ssub.s32 %s17, 1
      %s23 = ssub.s32 %s17, 2
      %s24 = sadd.s32 %s17, 1
      %s25 = ssub.s32 %s17, %s24
      %p26 = scmp.eq.s32.totalorder %s25, 0
      %s28 = sadd.s32 %s27, 1
      %s29 = scalar_select %p26, %s27, %s28
      %p32 = pneg %p26
      %p33 = scmp.eq.s32.totalorder %s17, 1
      %p34 = por %p32, %p33
      %p35 = scmp.ne.s32.totalorder %s27, %s30
      %p36 = scmp.eq.s32.totalorder %s17, 0
      %p37 = por %p35, %p36
      %p38 = scmp.ne.s32.totalorder %s27, %s30
      %p39 = scmp.eq.s32.totalorder %s22, 1
      %p40 = por %p38, %p39
      %p41 = scmp.ne.s32.totalorder %s30, %s31
      %p42 = scmp.eq.s32.totalorder %s22, 0
      %p43 = por %p41, %p42
      %p44 = scmp.ne.s32.totalorder %s30, %s31
      %p45 = scmp.eq.s32.totalorder %s23, 1
      %p46 = por %p44, %p45
      %p48 = scmp.ne.s32.totalorder %s31, %s47
      %p49 = scmp.eq.s32.totalorder %s23, 0
      %p50 = por %p48, %p49
      %s51 = ssub.s32 %s17, %s24
      %p52 = scmp.eq.s32.totalorder %s51, 0
      %s54 = sadd.s32 %s53, 1
      %s55 = scalar_select %p52, %s53, %s54
      %p58 = pneg %p52
      %p59 = scmp.eq.s32.totalorder %s17, 1
      %p60 = por %p58, %p59
      %p61 = scmp.ne.s32.totalorder %s53, %s56
      %p62 = scmp.eq.s32.totalorder %s17, 0
      %p63 = por %p61, %p62
      %p64 = scmp.ne.s32.totalorder %s53, %s56
      %p65 = scmp.eq.s32.totalorder %s22, 1
      %p66 = por %p64, %p65
      %p67 = scmp.ne.s32.totalorder %s56, %s57
      %p68 = scmp.eq.s32.totalorder %s22, 0
      %p69 = por %p67, %p68
      %p70 = scmp.ne.s32.totalorder %s56, %s57
      %p71 = scmp.eq.s32.totalorder %s23, 1
      %p72 = por %p70, %p71
      %p74 = scmp.ne.s32.totalorder %s57, %s73
      %p75 = scmp.eq.s32.totalorder %s23, 0
      %p76 = por %p74, %p75
      %s78 = sadd.s32 %s77, 1
      %p81 = scmp.eq.s32.totalorder %s17, 1
      %p82 = scmp.ne.s32.totalorder %s77, %s79
      %p83 = scmp.eq.s32.totalorder %s17, 0
      %p84 = por %p82, %p83
      %p85 = scmp.ne.s32.totalorder %s77, %s79
      %p86 = scmp.eq.s32.totalorder %s22, 1
      %p87 = por %p85, %p86
      %p88 = scmp.ne.s32.totalorder %s79, %s80
      %p89 = scmp.eq.s32.totalorder %s22, 0
      %p90 = por %p88, %p89
      %p91 = scmp.ne.s32.totalorder %s79, %s80
      %p92 = scmp.eq.s32.totalorder %s23, 1
      %p93 = por %p91, %p92
      %p95 = scmp.ne.s32.totalorder %s80, %s94
      %p96 = scmp.eq.s32.totalorder %s23, 0
      %p97 = por %p95, %p96
      %s99 = sadd.s32 %s98, 1
      %p102 = scmp.eq.s32.totalorder %s17, 1
      %p103 = scmp.ne.s32.totalorder %s98, %s100
      %p104 = scmp.eq.s32.totalorder %s17, 0
      %p105 = por %p103, %p104
      %p106 = scmp.ne.s32.totalorder %s98, %s100
      %p107 = scmp.eq.s32.totalorder %s22, 1
      %p108 = por %p106, %p107
      %p109 = scmp.ne.s32.totalorder %s100, %s101
      %p110 = scmp.eq.s32.totalorder %s22, 0
      %p111 = por %p109, %p110
      %p112 = scmp.ne.s32.totalorder %s100, %s101
      %p113 = scmp.eq.s32.totalorder %s23, 1
      %p114 = por %p112, %p113
      %p116 = scmp.ne.s32.totalorder %s101, %s115
      %p117 = scmp.eq.s32.totalorder %s23, 0
      %p118 = por %p116, %p117
      %s119 = ssub.s32 %s17, %s24
      %p120 = scmp.eq.s32.totalorder %s119, 0
      %s122 = sadd.s32 %s121, 1
      %s123 = scalar_select %p120, %s121, %s122
      %p126 = pneg %p120
      %p127 = scmp.eq.s32.totalorder %s17, 1
      %p128 = por %p126, %p127
      %p129 = scmp.ne.s32.totalorder %s121, %s124
      %p130 = scmp.eq.s32.totalorder %s17, 0
      %p131 = por %p129, %p130
      %p132 = scmp.ne.s32.totalorder %s121, %s124
      %p133 = scmp.eq.s32.totalorder %s22, 1
      %p134 = por %p132, %p133
      %p135 = scmp.ne.s32.totalorder %s124, %s125
      %p136 = scmp.eq.s32.totalorder %s22, 0
      %p137 = por %p135, %p136
      %p138 = scmp.ne.s32.totalorder %s124, %s125
      %p139 = scmp.eq.s32.totalorder %s23, 1
      %p140 = por %p138, %p139
      %p142 = scmp.ne.s32.totalorder %s125, %s141
      %p143 = scmp.eq.s32.totalorder %s23, 0
      %p144 = por %p142, %p143
      %p145 = scmp.le.s32.totalorder 1, %s17
      %p146 = scmp.lt.s32.totalorder %s17, 3
      %p147 = pnand %p145, %p146
      %p148 = pneg %p147
      // Predicated region
      $region9: #{bert_self_output.1} parent=5 // pred_check
        _
      $region10: #{bert_self_output.1} parent=5 // pred_check_branch
        %150 = sbr.rel (%p147) target = $region12
      $region11: #{bert_self_output.1} parent=5 // pred_region
        %s151 = ssub.s32 %s17, 1
        // Predicated region
        $region13: #{bert_self_output.1} parent=11 // pred_check
          %p152 = pneg %p90
        $region14: #{bert_self_output.1} parent=11 // pred_check_branch
          %154 = sbr.rel (%p152) target = $region16
        $region15: #{bert_self_output.1} parent=11 // pred_region
          %s156 = ssub.s32 512, 512
          %157 = vsyncadd [#allocation6], %s156
          %s158 = sshll.u32 [#allocation5], 4
          %s159 = int_to_ptr.vmem [resolvable:$true] %s158
          %164 = dma.hbm_to_vmem [thread:$0]  %s2, 512, %s159, [#allocation6], 128, 128, 8
        $region16: #{bert_self_output.1} parent=11 // pred_fallthru
          _
        // Predicated region
        $region17: #{bert_self_output.1} parent=11 // pred_check
          %p165 = pneg %p111
        $region18: #{bert_self_output.1} parent=11 // pred_check_branch
          %167 = sbr.rel (%p165) target = $region20
        $region19: #{bert_self_output.1} parent=11 // pred_region
          _
        $region20: #{bert_self_output.1} parent=11 // pred_fallthru
          _
      $region12: #{bert_self_output.1} parent=5 // pred_fallthru
        _
      %p168 = scmp.lt.s32.totalorder %s17, 2
      // Predicated region
      $region21: #{bert_self_output.1} parent=5 // pred_check
        %p169 = pneg %p168
      $region22: #{bert_self_output.1} parent=5 // pred_check_branch
        %171 = sbr.rel (%p169) target = $region24
      $region23: #{bert_self_output.1} parent=5 // pred_region
        // Predicated region
        $region25: #{bert_self_output.1} parent=23 // pred_check
          %p172 = pneg %p37
        $region26: #{bert_self_output.1} parent=23 // pred_check_branch
          %174 = sbr.rel (%p172) target = $region28
        $region27: #{bert_self_output.1} parent=23 // pred_region
          %p175 = scmp.lt.s32.totalorder %s17, 1
          %s176 = scalar_select %p175, %s17, 1
          %s177 = smul.addr %s176, 8
          %s178 = scalar_lea.vmem %s0, %s177
        $region28: #{bert_self_output.1} parent=23 // pred_fallthru
          _
        // Predicated region
        $region29: #{bert_self_output.1} parent=23 // pred_check
          %p179 = pneg %p63
        $region30: #{bert_self_output.1} parent=23 // pred_check_branch
          %181 = sbr.rel (%p179) target = $region32
        $region31: #{bert_self_output.1} parent=23 // pred_region
          %s182 = sand.u32 %s53, 1
          %s183 = scalar_lea.sflag [#allocation3], %s182
          %s184 = sand.u32 %s53, 1
          %s185 = smul.addr %s184, 8
          %s186 = scalar_lea.vmem [#allocation2], %s185
          %s188 = ssub.s32 128, 128
          %189 = vsyncadd %s183, %s188
          %s190 = smul.addr %s17, 128
          %s191 = scalar_lea.hbm %s1, %s190
          %s193 = sshll.u32 %s186, 4
          %s194 = int_to_ptr.vmem [resolvable:$true] %s193
          %196 = dma.hbm_to_vmem [thread:$0]  %s191, 128, %s194, %s183
        $region32: #{bert_self_output.1} parent=23 // pred_fallthru
          _
      $region24: #{bert_self_output.1} parent=5 // pred_fallthru
        _
      %p197 = scmp.le.s32.totalorder 1, %s17
      %p198 = scmp.lt.s32.totalorder %s17, 3
      %p199 = pnand %p197, %p198
      %p200 = pneg %p199
      // Predicated region
      $region33: #{bert_self_output.1} parent=5 // pred_check
        _
      $region34: #{bert_self_output.1} parent=5 // pred_check_branch
        %202 = sbr.rel (%p199) target = $region36
      $region35: #{bert_self_output.1} parent=5 // pred_region
        %s203 = ssub.s32 %s17, 1
        %s204 = sand.u32 %s56, 1
        %s205 = scalar_lea.sflag [#allocation3], %s204
        %s206 = sand.u32 %s56, 1
        %s207 = smul.addr %s206, 8
        %s208 = scalar_lea.vmem [#allocation2], %s207
        // Predicated region
        $region37: #{bert_self_output.1} parent=35 // pred_check
          %p209 = pneg %p69
        $region38: #{bert_self_output.1} parent=35 // pred_check_branch
          %211 = sbr.rel (%p209) target = $region40
        $region39: #{bert_self_output.1} parent=35 // pred_region
          %212 = dma.done %s205, 128
        $region40: #{bert_self_output.1} parent=35 // pred_fallthru
          _
        // Predicated region
        $region41: #{bert_self_output.1} parent=35 // pred_check
          %p213 = pneg %p90
        $region42: #{bert_self_output.1} parent=35 // pred_check_branch
          %215 = sbr.rel (%p213) target = $region44
        $region43: #{bert_self_output.1} parent=35 // pred_region
          %216 = dma.done [#allocation6], 512
        $region44: #{bert_self_output.1} parent=35 // pred_fallthru
          _
        %p217 = scmp.lt.s32.totalorder %s22, 1
        %s218 = scalar_select %p217, %s22, 1
        %s219 = smul.addr %s218, 8
        %s220 = scalar_lea.vmem %s0, %s219
        %p221 = pneg %p43
        %p222 = pneg %p40
        %s223 = sand.u32 %s56, 1
        %s224 = scalar_lea.sflag [#allocation3], %s223
        %s225 = sand.u32 %s56, 1
        %s226 = smul.addr %s225, 8
        %s227 = scalar_lea.vmem [#allocation2], %s226
        %p228 = pneg %p69
        %p229 = pneg %p66
        %p230 = pneg %p90
        %p231 = pneg %p87
        %p232 = pneg %p111
        %p233 = pneg %p108
        %p234 = pneg %p137
        %p235 = pneg %p134
        %s236 = sand.u32 %s124, 1
        %s237 = scalar_lea.sflag [#allocation4], %s236
        %s238 = sand.u32 %s124, 1
        %s239 = smul.addr %s238, 8
        %s240 = scalar_lea.vmem [#allocation7], %s239
        %p241 = scmp.lt.s32.totalorder %s22, 1
        %s242 = scalar_select %p241, %s22, 1
        %s243 = smul.addr %s242, 8
        %s244 = scalar_lea.vmem %s0, %s243
        %v245 = vld [vmem:[%s244] sm:$0xff]
        %v246 = vld [vmem:[#allocation5] sm:$0xff]
        %v247 = vld [vmem:[#allocation5 + $0x8] sm:$0xff]
        %v248 = vld [vmem:[#allocation5 + $0x10] sm:$0xff]
        %v249 = vld [vmem:[#allocation5 + $0x18] sm:$0xff]
        %v250 = vld [vmem:[%s3] sm:$0x7]
        %v251 = vlaneseq
        %v252 = vshrl.u32 %v251, 7
        %v253 = vsub.s32 0, %v252
        %v254 = vrot.slane %v250, %v253
        %vm255 = vcmask 261120
        %v257 = vsel %vm255, %v245, 0
        %259 = vmatprep.subr.mxu0 0.0
        %260 = vmatpush1.msra.mxu0 0.0
        %261 = vmatprep.subr.mxu0 0.0
        %262 = vmatpush1.msra.mxu0 0.0
        %263 = vmatprep.subr.mxu0 0.0
        %264 = vmatpush1.msra.mxu0 0.0
        %265 = vmatprep.subr.mxu0 0.0
        %266 = vmatpush1.msra.mxu0 0.0
        %267 = vmatprep.subr.mxu0 0.0
        %268 = vmatpush1.msra.mxu0 0.0
        %269 = vmatprep.subr.mxu0 0.0
        %270 = vmatpush1.msra.mxu0 0.0
        %271 = vmatprep.subr.mxu0 0.0
        %272 = vmatpush1.msra.mxu0 0.0
        %273 = vmatprep.subr.mxu0 0.0
        %274 = vmatpush1.msra.mxu0 0.0
        %275 = vmatprep.subr.mxu0 0.0
        %276 = vmatpush1.msra.mxu0 0.0
        %277 = vmatprep.subr.mxu0 0.0
        %278 = vmatpush1.msra.mxu0 0.0
        %279 = vmatprep.subr.mxu0 0.0
        %280 = vmatpush1.msra.mxu0 0.0
        %281 = vmatprep.subr.mxu0 0.0
        %282 = vmatpush1.msra.mxu0 0.0
        %283 = vmatprep.subr.mxu0 0.0
        %284 = vmatpush1.msra.mxu0 %v249
        %285 = vmatprep.subr.mxu0 0.0
        %286 = vmatpush1.msra.mxu0 %v248
        %287 = vmatprep.subr.mxu0 0.0
        %288 = vmatpush1.msra.mxu0 %v247
        %289 = vmatprep.subr.mxu0 0.0
        %290 = vmatpush1.msra.mxu0 %v246
        %291 = vmatprep.subr.mxu0 0.0
        %292 = vmatpush2.msra.mxu0 0.0
        %293 = vmatprep.subr.mxu0 0.0
        %294 = vmatpush2.msra.mxu0 0.0
        %295 = vmatprep.subr.mxu0 0.0
        %296 = vmatpush2.msra.mxu0 0.0
        %297 = vmatprep.subr.mxu0 0.0
        %298 = vmatpush2.msra.mxu0 0.0
        %299 = vmatprep.subr.mxu0 0.0
        %300 = vmatpush2.msra.mxu0 0.0
        %301 = vmatprep.subr.mxu0 0.0
        %302 = vmatpush2.msra.mxu0 0.0
        %303 = vmatprep.subr.mxu0 0.0
        %304 = vmatpush2.msra.mxu0 0.0
        %305 = vmatprep.subr.mxu0 0.0
        %306 = vmatpush2.msra.mxu0 0.0
        %307 = vmatprep.subr.mxu0 0.0
        %308 = vmatpush2.msra.mxu0 0.0
        %309 = vmatprep.subr.mxu0 0.0
        %310 = vmatpush2.msra.mxu0 0.0
        %311 = vmatprep.subr.mxu0 0.0
        %312 = vmatpush2.msra.mxu0 0.0
        %313 = vmatprep.subr.mxu0 0.0
        %314 = vmatpush2.msra.mxu0 0.0
        %315 = vmatprep.subr.mxu0 0.0
        %316 = vmatpush2.msra.mxu0 0.0
        %317 = vmatprep.subr.mxu0 0.0
        %318 = vmatpush2.msra.mxu0 0.0
        %319 = vmatprep.subr.mxu0 0.0
        %320 = vmatpush2.msra.mxu0 0.0
        %321 = vmatprep.subr.mxu0 0.0
        %322 = vmatpush2.msra.mxu0 0.0
        %323 = vmatprep.mubr.f32.mxu0 0.0
        %324 = vmatmul.mubr.f32.gmra.mxu0 %v257
        %v325 = vpop.f32.mrf.mxu0
        %v326 = vadd.f32 %v254, %v325
        %v327 = vpop.f32.mrf.mxu0
        %328 = vdwg.mxu0
        %v329 = vld [vmem:[%s208] sm:$0xff]
        %v330 = vadd.f32 %v326, %v329
        %v331 = vsel %vm255, %v330, 0.0
        %332 = vadd.xlane.f32.xlu0 %v331
        %v333 = vpop.xlane.xlu0 %332
        %v334 = vmul.f32 %v333, 0.03125
        %v335 = vsub.f32 %v330, %v334
        %v336 = vmul.f32 %v335, %v335
        %v337 = vsel %vm255, %v336, 0.0
        %338 = vadd.xlane.f32.xlu0 %v337
        %v339 = vpop.xlane.xlu0 %338
        %v340 = vmul.f32 %v339, 0.03125
        %v341 = vadd.f32 %v340, 1e-12
        %v342 = vrsqrt.pop %v341
        %v343 = vlaneseq
        %v344 = vshrl.u32 %v343, 7
        %v345 = vsub.s32 1, %v344
        %v346 = vrot.slane %v250, %v345
        %v347 = vmul.f32 %v342, %v346
        %v348 = vmul.f32 %v335, %v347
        %v349 = vlaneseq
        %v350 = vshrl.u32 %v349, 7
        %v351 = vsub.s32 2, %v350
        %v352 = vrot.slane %v250, %v351
        %v353 = vadd.f32 %v348, %v352
        %354 = vst.msk [vmem:[%s240] sm:$0xff] %vm255, %v353
        %s355 = sand.u32 %s124, 1
        %s356 = scalar_lea.sflag [#allocation4], %s355
        %s357 = sand.u32 %s124, 1
        %s358 = smul.addr %s357, 8
        %s359 = scalar_lea.vmem [#allocation7], %s358
        // Predicated region
        $region45: #{bert_self_output.1} parent=35 // pred_check
          %p360 = pneg %p134
        $region46: #{bert_self_output.1} parent=35 // pred_check_branch
          %362 = sbr.rel (%p360) target = $region48
        $region47: #{bert_self_output.1} parent=35 // pred_region
          %s364 = ssub.s32 128, 128
          %365 = vsyncadd %s356, %s364
          %s366 = smul.addr %s22, 128
          %s367 = scalar_lea.hbm %s4, %s366
          %s369 = sshll.u32 %s359, 4
          %s370 = int_to_ptr.vmem [resolvable:$true] %s369
          %372 = dma.vmem_to_hbm [thread:$0]  %s370, 128, %s367, %s356
        $region48: #{bert_self_output.1} parent=35 // pred_fallthru
          _
      $region36: #{bert_self_output.1} parent=5 // pred_fallthru
        _
      %p373 = scmp.le.s32.totalorder 2, %s17
      // Predicated region
      $region49: #{bert_self_output.1} parent=5 // pred_check
        %p374 = pneg %p373
      $region50: #{bert_self_output.1} parent=5 // pred_check_branch
        %376 = sbr.rel (%p374) target = $region52
      $region51: #{bert_self_output.1} parent=5 // pred_region
        %s377 = ssub.s32 %s17, 2
        // Predicated region
        $region53: #{bert_self_output.1} parent=51 // pred_check
          %p378 = pneg %p140
        $region54: #{bert_self_output.1} parent=51 // pred_check_branch
          %380 = sbr.rel (%p378) target = $region56
        $region55: #{bert_self_output.1} parent=51 // pred_region
          %s381 = sand.u32 %s125, 1
          %s382 = scalar_lea.sflag [#allocation4], %s381
          %s383 = sand.u32 %s125, 1
          %s384 = smul.addr %s383, 8
          %s385 = scalar_lea.vmem [#allocation7], %s384
          %386 = dma.done %s382, 128
        $region56: #{bert_self_output.1} parent=51 // pred_fallthru
          _
      $region52: #{bert_self_output.1} parent=5 // pred_fallthru
        _
    $region6: #{bert_self_output.1} parent=1 // loop_footer
      %s21 = sadd.s32 1, %s17
    $region7: #{bert_self_output.1} parent=1 // loop_footer_branch
      %16 = sbr.rel target = $region3
    $region8: #{bert_self_output.1} parent=1 // loop_exit
      _
    %387 = vsyncpa [#allocation3], 1
    %s388 = scalar_lea.sflag [#allocation3], 1
    %389 = vsyncpa %s388, 1
    %390 = vsyncpa [#allocation6], 1
    %391 = vsyncpa [#allocation4], 1
    %s392 = scalar_lea.sflag [#allocation4], 1
    %393 = vsyncpa %s392, 1

</llo_original>
